<compile_context>
chip_gen: v7x
topology: tpu7x:2x2x1
jax: 0.10.0
libtpu: 0.0.40
codegen_flags: <defaults>
</compile_context>

<pallas_src>
import numpy as np

import jax
import jax.numpy as jnp
from jax.experimental import pallas as pl
from jax.experimental.pallas import tpu as pltpu


INPUT_LAYER_NAME = "Input"
OUTPUT_LAYER_NAME = "Output"
LANE = 128  # pad all feature widths to this so loads/stores are lane-dense
_DEFAULT_SEL = slice(0, None, 1)


def _round_up(x, m):
    return ((x + m - 1) // m) * m


def _apply_activation(h, name):
    if name in (None, "identity"):
        return h
    if name == "tanh":
        return jnp.tanh(h)
    if name == "relu":
        return jnp.maximum(h, 0.0)
    if name == "sigmoid":
        return jax.nn.sigmoid(h)
    raise NotImplementedError(f"activation {name!r}")


def _vmem_capacity_bytes():
    """Physical VMEM of the attached TPU generation (fallback: v7x's 64 MiB)."""
    try:
        info = pltpu.get_tpu_info()
        cap = getattr(info, "vmem_capacity_bytes", None)
        if cap:
            return int(cap)
    except Exception:
        pass
    return 64 * 1024 * 1024


class PallasNetwork:
    """JAX/Pallas port of siml Network: the block DAG fused into one TPU kernel."""

    def __init__(self, block_settings, input_length, output_length, key,
                 mxu_dtype=jnp.bfloat16):
        # bf16 operands run the MXU at native rate on every generation and
        # halve operand/vreg bytes; accumulation stays f32 inside the dots.
        self.mxu_dtype = mxu_dtype
        self.mxu_bytes = jnp.dtype(mxu_dtype).itemsize
        self.input_length = int(input_length)
        self.output_length = int(output_length)
        self.block_settings = {bs["name"]: dict(bs) for bs in block_settings}

        # ---- call graph: Input -> is_first, block -> destinations, is_last -> Output
        edges = []
        for bs in block_settings:
            if bs.get("is_first", False):
                edges.append((INPUT_LAYER_NAME, bs["name"]))
            for dst in bs.get("destinations", []):
                edges.append((bs["name"], dst))
            if bs.get("is_last", False):
                edges.append((bs["name"], OUTPUT_LAYER_NAME))
        nodes = ([bs["name"] for bs in block_settings]
                 + [INPUT_LAYER_NAME, OUTPUT_LAYER_NAME])
        self.predecessors = {n: [] for n in nodes}
        successors = {n: [] for n in nodes}
        for s, d in edges:
            self.predecessors[d].append(s)
            successors[s].append(d)

        # Kahn topological sort.
        indeg = {n: len(self.predecessors[n]) for n in nodes}
        ready = [n for n in nodes if indeg[n] == 0]
        order = []
        while ready:
            n = ready.pop(0)
            order.append(n)
            for m in successors[n]:
                indeg[m] -= 1
                if indeg[m] == 0:
                    ready.append(m)
        if len(order) != len(nodes):
            raise ValueError("cycle found in the network")
        self.sorted_graph_nodes = order

        self.block_settings[INPUT_LAYER_NAME] = dict(
            name=INPUT_LAYER_NAME, type="identity")
        self.block_settings[OUTPUT_LAYER_NAME] = dict(
            name=OUTPUT_LAYER_NAME, type="identity")

        for n in nodes:
            if n == INPUT_LAYER_NAME:
                continue
            if len(self.predecessors[n]) != 1:
                # TODO(synk): multi-predecessor blocks (concatenator/reducer) not implemented.
                raise ValueError(
                    f"{n} has {len(self.predecessors[n])} predecessors")

        # ---- logical (unpadded) feature width per node, in topo order
        self.widths = {}
        for n in self.sorted_graph_nodes:
            bs = self.block_settings[n]
            if n == INPUT_LAYER_NAME:
                self.widths[n] = self.input_length
                continue
            pred = self.predecessors[n][0]
            sel = bs.get("input_selection", _DEFAULT_SEL)
            if isinstance(sel, slice):
                in_width = len(range(self.widths[pred])[sel])
            else:
                in_width = len(sel)
            btype = bs["type"]
            if btype in ("mlp", "gcn"):
                self.widths[n] = int(bs["nodes"][-1])
            elif btype in ("identity", "activation"):
                self.widths[n] = in_width
            else:
                # TODO(synk): other siml block types (lstm, iso_gcn, tcn, ...) unused here.
                raise NotImplementedError(f"block type {btype!r}")
            if self.widths[n] > LANE:
                raise NotImplementedError("feature width > 128 lanes")

        # ---- deterministic parameter init for trainable blocks (logical sizes)
        self.params = {}
        for bs in block_settings:
            if bs["type"] in ("mlp", "gcn"):
                cin, cout = int(bs["nodes"][0]), int(bs["nodes"][-1])
                key, kw, kb = jax.random.split(key, 3)
                w = jax.random.normal(kw, (cin, cout), jnp.float32) / jnp.sqrt(
                    jnp.float32(cin))
                b = jax.random.normal(kb, (1, cout), jnp.float32) * 0.01
                self.params[bs["name"]] = (w, b)

        self.has_support = any(bs["type"] == "gcn" for bs in block_settings)

        # ---- which nodes are evaluated INSIDE the row-tiled kernel
        # (walk Output's predecessor chain; a GCN cuts the walk because its
        #  full-row input X@W is precomputed outside the kernel)
        in_kernel = set()
        stack = [OUTPUT_LAYER_NAME]
        while stack:
            n = stack.pop()
            if n in in_kernel:
                continue
            in_kernel.add(n)
            if n == INPUT_LAYER_NAME:
                continue
            if self.block_settings[n]["type"] == "gcn":
                continue
            stack.extend(self.predecessors[n])
        self.in_kernel_nodes = in_kernel
        self.need_x = INPUT_LAYER_NAME in in_kernel
        self.kernel_mlps = [n for n in self.sorted_graph_nodes
                            if n in in_kernel
                            and self.block_settings[n]["type"] == "mlp"]
        self.kernel_gcns = [n for n in self.sorted_graph_nodes
                            if n in in_kernel
                            and self.block_settings[n]["type"] == "gcn"]

        # supports used by in-kernel GCNs
        self.kernel_support_indices = []
        self.kernel_gcn_slot = {}
        for g in self.kernel_gcns:
            sidx = int(self.block_settings[g].get("support_input_indices", [0])[0])
            if sidx not in self.kernel_support_indices:
                self.kernel_support_indices.append(sidx)
            self.kernel_gcn_slot[g] = self.kernel_support_indices.index(sidx)

        # nodes whose FULL-row hidden must be precomputed outside (ancestors of
        # in-kernel GCNs), computed once per forward in plain XLA.
        outside = set()
        for g in self.kernel_gcns:
            stack = list(self.predecessors[g])
            while stack:
                p = stack.pop()
                if p in outside:
                    continue
                outside.add(p)
                stack.extend(self.predecessors[p])
        self.outside_nodes = outside

        self._fwd_cache = {}       # per-N: (jitted fused forward, n_pad)
        self._support_cache = {}   # per-N: (source support list, padded bf16 supports)

    # ------------------------------------------------------------------
    # shared per-block math (pure JAX) — used by forward_ref and by the
    # outside (full-row) GCN-input precompute inside the jitted forward.
    # ------------------------------------------------------------------
    def _eval_node_ref(self, node, hid, params, supports):
        bs = self.block_settings[node]
        pred = self.predecessors[node][0]
        sel = bs.get("input_selection", _DEFAULT_SEL)
        if isinstance(sel, slice) and sel == _DEFAULT_SEL:
            hin = hid[pred]
        else:
            hin = hid[pred][..., sel]
        btype = bs["type"]
        acts = bs.get("activations", ["identity"])
        if btype == "identity":
            h = hin
        elif btype == "activation":
            h = _apply_activation(hin, acts[0])
        elif btype == "mlp":
            w, b = params[node]
            h = _apply_activation(hin @ w + b, acts[0])
        elif btype == "gcn":
            w, b = params[node]
            s = supports[int(bs.get("support_input_indices", [0])[0])]
            h = _apply_activation(s @ (hin @ w) + b, acts[0])
        else:
            raise NotImplementedError(btype)
        coeff = bs.get("coeff", None)
        if coeff is not None:
            h = h * float(coeff)
        return h

    # ------------------------------------------------------------------
    # fused kernel builder (one pallas_call for the per-row DAG)
    # ------------------------------------------------------------------
    def _build_forward(self, n_nodes):
        n = int(n_nodes)
        # lane dimension of the support maps to lanes -> pad to 128 when any
        # GCN exists (lane-dense DMA, clean MXU K); otherwise sublane-pad to 8.
        if self.has_support:
            n_pad = _round_up(max(n, LANE), LANE)
        else:
            n_pad = _round_up(max(n, 8), 8)

        settings = self.block_settings
        preds = self.predecessors
        widths = self.widths
        sorted_nodes = self.sorted_graph_nodes
        outside_nodes = self.outside_nodes
        in_kernel_nodes = self.in_kernel_nodes
        kernel_mlps = list(self.kernel_mlps)
        kernel_gcns = list(self.kernel_gcns)
        kernel_gcn_slot = dict(self.kernel_gcn_slot)
        kernel_support_indices = list(self.kernel_support_indices)
        need_x = self.need_x
        nsk = len(kernel_support_indices)
        ngk = len(kernel_gcns)
        mxu_dtype = self.mxu_dtype
        mxu_bytes = self.mxu_bytes
        store_dtype = mxu_dtype
        out_width = widths[OUTPUT_LAYER_NAME]
        eval_node_ref = self._eval_node_ref

        # ---- generation-aware row tiling from the physical VMEM budget
        vmem_cap = _vmem_capacity_bytes()           # 64 MiB v7x, 128 MiB v5e/v6e
        tiling_budget = int(vmem_cap * 0.55)        # headroom for intermediates
        vmem_limit = int(vmem_cap * 0.80)

        def vmem_needed(rt):
            per_step = rt * LANE * 4                          # output tile (f32)
            if need_x:
                per_step += rt * LANE * 4                     # x tile (f32)
            per_step += nsk * rt * n_pad * mxu_bytes          # support tiles (bf16)
            resident = ngk * n_pad * LANE * mxu_bytes         # full-row XW per GCN
            resident += len(kernel_mlps) * (LANE * LANE * mxu_bytes + LANE * 4)
            resident += ngk * LANE * 4                        # GCN biases
            live = max(len(in_kernel_nodes), 2) * rt * LANE * 4   # memoized hiddens
            return 2 * (per_step + resident) + live           # x2: double buffering

        candidates = [n_pad] + [t for t in (2048, 1024, 512, 256, 128, 64, 32, 16, 8)
                                if t < n_pad and n_pad % t == 0]
        row_tile = candidates[-1]
        for cand in candidates:
            if vmem_needed(cand) <= tiling_budget:
                row_tile = cand
                break
        grid = (n_pad // row_tile,)

        # ------------------------------------------------------------------
        def kernel(*refs):
            pos = 0
            x_ref = None
            if need_x:
                x_ref = refs[pos]
                pos += 1
            s_refs = refs[pos:pos + nsk]
            pos += nsk
            xw_refs = dict(zip(kernel_gcns, refs[pos:pos + ngk]))
            pos += ngk
            mlp_wb = {}
            for name in kernel_mlps:
                mlp_wb[name] = (refs[pos], refs[pos + 1])
                pos += 2
            gcn_b = dict(zip(kernel_gcns, refs[pos:pos + ngk]))
            pos += ngk
            o_ref = refs[pos]

            memo = {}

            def select(h, logical_width, sel):
                # in-kernel input_selection: static slice + zero re-pad
                if sel is None or (isinstance(sel, slice) and sel == _DEFAULT_SEL):
                    return h
                if isinstance(sel, slice):
                    r = range(logical_width)[sel]
                    if r.step == 1:
                        hsel = h[:, r.start:r.stop]
                    else:
                        # TODO(synk): strided lane slices may force a relayout on TPU.
                        hsel = h[:, r.start:r.stop:r.step]
                    return jnp.pad(hsel, ((0, 0), (0, LANE - hsel.shape[1])))
                # TODO(synk): list-based input_selection (gather) not supported in-kernel.
                raise NotImplementedError("list input_selection")

            def mm(a, b_):
                return jnp.dot(a.astype(mxu_dtype), b_.astype(mxu_dtype),
                               preferred_element_type=jnp.float32)

            def hidden(node):
                if node in memo:
                    return memo[node]
                bs = settings[node]
                btype = bs["type"]
                if node == INPUT_LAYER_NAME:
                    h = x_ref[...]
                else:
                    pred = preds[node][0]
                    sel = bs.get("input_selection", _DEFAULT_SEL)
                    acts = bs.get("activations", ["identity"])
                    if btype == "gcn":
                        # input_selection and X@W done ONCE outside (full rows);
                        # here only the row-tiled S_tile @ XW + b, activation.
                        h = mm(s_refs[kernel_gcn_slot[node]][...],
                               xw_refs[node][...]) + gcn_b[node][...]
                        h = _apply_activation(h, acts[0])
                    elif btype == "mlp":
                        w_ref, b_ref = mlp_wb[node]
                        hin = select(hidden(pred), widths[pred], sel)
                        h = mm(hin, w_ref[...]) + b_ref[...]
                        h = _apply_activation(h, acts[0])
                    elif btype == "identity":
                        h = select(hidden(pred), widths[pred], sel)
                    elif btype == "activation":
                        h = _apply_activation(
                            select(hidden(pred), widths[pred], sel), acts[0])
                    else:
                        raise NotImplementedError(btype)
                    coeff = bs.get("coeff", None)
                    if coeff is not None:
                        h = h * float(coeff)   # folded into the producing epilogue
                h = h.astype(store_dtype)      # bf16 hiddens -> half vreg pressure
                memo[node] = h
                return h

            o_ref[...] = hidden(OUTPUT_LAYER_NAME).astype(o_ref.dtype)

        # ------------------------------------------------------------------
        in_specs = []
        if need_x:
            in_specs.append(pl.BlockSpec((row_tile, LANE), lambda i: (i, 0)))
        for _ in range(nsk):                                     # row-tiled supports
            in_specs.append(pl.BlockSpec((row_tile, n_pad), lambda i: (i, 0)))
        for _ in range(ngk):                                     # full-row XW (resident)
            in_specs.append(pl.BlockSpec((n_pad, LANE), lambda i: (0, 0)))
        for _ in kernel_mlps:
            in_specs.append(pl.BlockSpec((LANE, LANE), lambda i: (0, 0)))  # W
            in_specs.append(pl.BlockSpec((1, LANE), lambda i: (0, 0)))     # b
        for _ in kernel_gcns:
            in_specs.append(pl.BlockSpec((1, LANE), lambda i: (0, 0)))     # b
        out_specs = pl.BlockSpec((row_tile, LANE), lambda i: (i, 0))

        fused = pl.pallas_call(
            kernel,
            out_shape=jax.ShapeDtypeStruct((n_pad, LANE), jnp.float32),
            grid=grid,
            in_specs=in_specs,
            out_specs=out_specs,
            compiler_params=pltpu.CompilerParams(
                dimension_semantics=("parallel",),   # shard row tiles across TCs
                vmem_limit_bytes=vmem_limit,
            ),
        )

        # ------------------------------------------------------------------
        def impl(x, supports_raw, supports_padded, params):
            x = x.astype(jnp.float32)

            # Full-row GCN inputs, computed ONCE per forward in plain XLA
            # (not once per row tile) -> tiled path scales linearly.
            hid = {}
            for node in sorted_nodes:
                if node not in outside_nodes:
                    continue
                if node == INPUT_LAYER_NAME:
                    hid[node] = x
                else:
                    hid[node] = eval_node_ref(node, hid, params, supports_raw)

            xw_inputs = []
            for g in kernel_gcns:
                pred = preds[g][0]
                sel = settings[g].get("input_selection", _DEFAULT_SEL)
                if isinstance(sel, slice) and sel == _DEFAULT_SEL:
                    hin = hid[pred]
                else:
                    hin = hid[pred][..., sel]
                w, _ = params[g]
                xw = (hin @ w).astype(mxu_dtype)
                xw_inputs.append(
                    jnp.pad(xw, ((0, n_pad - n), (0, LANE - xw.shape[1]))))

            flat_params = []
            for name in kernel_mlps:
                w, b = params[name]
                flat_params.append(jnp.pad(
                    w.astype(mxu_dtype),
                    ((0, LANE - w.shape[0]), (0, LANE - w.shape[1]))))
                flat_params.append(jnp.pad(b, ((0, 0), (0, LANE - b.shape[1]))))
            for name in kernel_gcns:
                _, b = params[name]
                flat_params.append(jnp.pad(b, ((0, 0), (0, LANE - b.shape[1]))))

            args = []
            if need_x:
                args.append(jnp.pad(x, ((0, n_pad - n), (0, LANE - x.shape[1]))))
            args.extend(supports_padded)
            args.extend(xw_inputs)
            args.extend(flat_params)

            out = fused(*args)
            return out[:n, :out_width]

        return jax.jit(impl), n_pad

    # ------------------------------------------------------------------
    def _padded_supports(self, supports, n, n_pad):
        # cached across calls: the support is static per graph, so the big
        # N x N cast-to-bf16 + zero-pad happens once, not every forward.
        entry = self._support_cache.get(n)
        if entry is not None:
            src, padded = entry
            if len(src) == len(supports) and all(a is b for a, b in zip(src, supports)):
                return padded
        padded = tuple(
            jnp.pad(jnp.asarray(supports[si]).astype(self.mxu_dtype),
                    ((0, n_pad - n), (0, n_pad - n)))
            for si in self.kernel_support_indices)
        self._support_cache[n] = (list(supports), padded)
        return padded

    # ------------------------------------------------------------------
    def forward(self, x_):
        x = x_["x"]
        supports = list(x_.get("supports", []))
        n = x.shape[0]
        if n not in self._fwd_cache:
            self._fwd_cache[n] = self._build_forward(n)
        fwd, n_pad = self._fwd_cache[n]
        supports_padded = self._padded_supports(supports, n, n_pad)
        return fwd(x, tuple(supports), supports_padded, self.params)

    # Pure-JAX reference (same math & semantics, no Pallas) for correctness.
    def forward_ref(self, x_):
        x = x_["x"]
        supports = list(x_.get("supports", []))
        hid = {}
        for node in self.sorted_graph_nodes:
            if node == INPUT_LAYER_NAME:
                hid[node] = x
            else:
                hid[node] = self._eval_node_ref(node, hid, self.params, supports)
        return hid[OUTPUT_LAYER_NAME]


if __name__ == "__main__":
    key = jax.random.PRNGKey(0)

    n_nodes = 64
    input_length = 16
    hidden_length = 32
    output_length = 8

    # Small concrete DAG: Input -> MLP -> GCN -> Activation -> MLP -> Output
    block_settings = [
        dict(name="IN_MLP", type="mlp", nodes=[input_length, hidden_length],
             activations=["tanh"], destinations=["GCN1"], is_first=True),
        dict(name="GCN1", type="gcn", nodes=[hidden_length, hidden_length],
             activations=["tanh"], destinations=["ACT1"],
             support_input_indices=[0]),
        dict(name="ACT1", type="activation", activations=["tanh"],
             destinations=["OUT_MLP"]),
        dict(name="OUT_MLP", type="mlp", nodes=[hidden_length, output_length],
             activations=["identity"], destinations=[], is_last=True,
             coeff=0.5),
    ]

    key, knet, kx, ks = jax.random.split(key, 4)

    # bf16-MXU network (fast default) and f32-MXU network (tight-tolerance
    # parity check) built from the SAME parameter key.
    net_bf16 = PallasNetwork(block_settings, input_length, output_length, knet)
    net_f32 = PallasNetwork(block_settings, input_length, output_length, knet,
                            mxu_dtype=jnp.float32)

    x = jax.random.normal(kx, (n_nodes, input_length), jnp.float32)
    # Dense row-normalized "support" (graph adjacency with self loops).
    adj = (jax.random.uniform(ks, (n_nodes, n_nodes)) < 0.1).astype(jnp.float32)
    adj = adj + jnp.eye(n_nodes, dtype=jnp.float32)
    support = adj / jnp.sum(adj, axis=1, keepdims=True)

    x_ = {"x": x, "supports": [support]}

    out_f32 = jax.block_until_ready(net_f32.forward(x_))
    ref_f32 = jax.block_until_ready(net_f32.forward_ref(x_))
    out_bf16 = jax.block_until_ready(net_bf16.forward(x_))
    ref_bf16 = jax.block_until_ready(net_bf16.forward_ref(x_))

    assert out_f32.shape == (n_nodes, output_length)
    assert out_bf16.shape == (n_nodes, output_length)
    # f32 MXU path: tight parity with the pure-JAX reference.
    assert jnp.allclose(out_f32, ref_f32, atol=1e-5, rtol=1e-5)
    # bf16 MXU path: tolerance loosened for bf16 operand rounding.
    assert jnp.allclose(out_bf16, ref_bf16, atol=3e-2, rtol=3e-2)

    print("KERNEL_OK")
</pallas_src>

<mosaic_0001>
module attributes {stable_mosaic.version = 11 : i64} {
  func.func @kernel(%arg0: i32, %arg1: memref<128x128xf32, #tpu.memory_space<vmem>>, %arg2: memref<128x128xf32, #tpu.memory_space<vmem>>, %arg3: memref<128x128xf32, #tpu.memory_space<vmem>>, %arg4: memref<1x128xf32, #tpu.memory_space<vmem>>, %arg5: memref<1x128xf32, #tpu.memory_space<vmem>>, %arg6: memref<128x128xf32, #tpu.memory_space<vmem>>) attributes {dimension_semantics = [#tpu.dimension_semantics<parallel>], iteration_bounds = array<i64: 1>, scalar_prefetch = 0 : i64, scratch_operands = 0 : i64, tpu.core_type = #tpu.core_type<tc>, window_params = [{transform_indices = @transform_0, window_bounds = array<i64: 128, 128>}, {pipeline_mode = #tpu.pipeline_mode<synchronous>, transform_indices = @transform_1, window_bounds = array<i64: 128, 128>}, {pipeline_mode = #tpu.pipeline_mode<synchronous>, transform_indices = @transform_2, window_bounds = array<i64: 128, 128>}, {pipeline_mode = #tpu.pipeline_mode<synchronous>, transform_indices = @transform_3, window_bounds = array<i64: 1, 128>}, {pipeline_mode = #tpu.pipeline_mode<synchronous>, transform_indices = @transform_4, window_bounds = array<i64: 1, 128>}, {transform_indices = @transform_5, window_bounds = array<i64: 128, 128>}]} {
    %c0 = arith.constant 0 : index
    %c0_0 = arith.constant 0 : index
    %0 = vector.load %arg1[%c0, %c0_0] : memref<128x128xf32, #tpu.memory_space<vmem>>, vector<128x128xf32>
    %c0_1 = arith.constant 0 : index
    %c0_2 = arith.constant 0 : index
    %1 = vector.load %arg2[%c0_1, %c0_2] : memref<128x128xf32, #tpu.memory_space<vmem>>, vector<128x128xf32>
    %cst = arith.constant dense<0.000000e+00> : vector<128x128xf32>
    %2 = tpu.matmul %0, %1, %cst {dimension_numbers = #tpu.dot_dimension_numbers<[1], [0], [0], [1], [0, 0, 1, 1], [], []>} : vector<128x128xf32>, vector<128x128xf32>, vector<128x128xf32> -> vector<128x128xf32>
    %c0_3 = arith.constant 0 : index
    %c0_4 = arith.constant 0 : index
    %3 = vector.load %arg5[%c0_3, %c0_4] : memref<1x128xf32, #tpu.memory_space<vmem>>, vector<1x128xf32>
    %4 = vector.broadcast %3 : vector<1x128xf32> to vector<128x128xf32>
    %5 = arith.addf %2, %4 : vector<128x128xf32>
    %6 = math.tanh %5 : vector<128x128xf32>
    %7 = math.tanh %6 : vector<128x128xf32>
    %c0_5 = arith.constant 0 : index
    %c0_6 = arith.constant 0 : index
    %8 = vector.load %arg3[%c0_5, %c0_6] : memref<128x128xf32, #tpu.memory_space<vmem>>, vector<128x128xf32>
    %cst_7 = arith.constant dense<0.000000e+00> : vector<128x128xf32>
    %9 = tpu.matmul %7, %8, %cst_7 {dimension_numbers = #tpu.dot_dimension_numbers<[1], [0], [0], [1], [0, 0, 1, 1], [], []>} : vector<128x128xf32>, vector<128x128xf32>, vector<128x128xf32> -> vector<128x128xf32>
    %c0_8 = arith.constant 0 : index
    %c0_9 = arith.constant 0 : index
    %10 = vector.load %arg4[%c0_8, %c0_9] : memref<1x128xf32, #tpu.memory_space<vmem>>, vector<1x128xf32>
    %11 = vector.broadcast %10 : vector<1x128xf32> to vector<128x128xf32>
    %12 = arith.addf %9, %11 : vector<128x128xf32>
    %cst_10 = arith.constant 5.000000e-01 : f32
    %13 = vector.broadcast %cst_10 : f32 to vector<128x128xf32>
    %14 = arith.mulf %12, %13 : vector<128x128xf32>
    %c0_11 = arith.constant 0 : index
    %c0_12 = arith.constant 0 : index
    %15 = vector.load %arg6[%c0_11, %c0_12] : memref<128x128xf32, #tpu.memory_space<vmem>>, vector<128x128xf32>
    tpu.vector_store %arg6[%c0_11, %c0_12], %14 {strides = array<i32>} : memref<128x128xf32, #tpu.memory_space<vmem>>, vector<128x128xf32>,
    return
  }
  func.func @transform_0(%arg0: i32) -> (i32, i32) {
    %c0_i32 = arith.constant 0 : i32
    %c0_i32_0 = arith.constant 0 : i32
    return %arg0, %c0_i32 : i32, i32
  }
  func.func @transform_1(%arg0: i32) -> (i32, i32) {
    %c0_i32 = arith.constant 0 : i32
    %c0_i32_0 = arith.constant 0 : i32
    %c0_i32_1 = arith.constant 0 : i32
    return %c0_i32, %c0_i32_0 : i32, i32
  }
  func.func @transform_2(%arg0: i32) -> (i32, i32) {
    %c0_i32 = arith.constant 0 : i32
    %c0_i32_0 = arith.constant 0 : i32
    %c0_i32_1 = arith.constant 0 : i32
    return %c0_i32, %c0_i32_0 : i32, i32
  }
  func.func @transform_3(%arg0: i32) -> (i32, i32) {
    %c0_i32 = arith.constant 0 : i32
    %c0_i32_0 = arith.constant 0 : i32
    %c0_i32_1 = arith.constant 0 : i32
    return %c0_i32, %c0_i32_0 : i32, i32
  }
  func.func @transform_4(%arg0: i32) -> (i32, i32) {
    %c0_i32 = arith.constant 0 : i32
    %c0_i32_0 = arith.constant 0 : i32
    %c0_i32_1 = arith.constant 0 : i32
    return %c0_i32, %c0_i32_0 : i32, i32
  }
  func.func @transform_5(%arg0: i32) -> (i32, i32) {
    %c0_i32 = arith.constant 0 : i32
    %c0_i32_0 = arith.constant 0 : i32
    return %arg0, %c0_i32 : i32, i32
  }
}

</mosaic_0001>

<llo_original>
// kernel: impl.1
$region0: #{impl.1}
  #allocation0 [shape = 'u32[]', space=smem, size = 0x4, offset = 0x4, fixed_abs, tag = 'smem constant byte address 0x4 - core index']
  #allocation1 [shape = 'u32[144,128]{1,0:T(1,128)}', space=vmem, size = 0x12000, scoped, tag = 'internal scratch']
  %s0 = inlined_call_operand.vmem [shape: f32[128,128], index: 0, kind: input, shape index: {}]
  %s1 = inlined_call_operand.vmem [shape: f32[128,128], index: 1, kind: input, shape index: {}]
  %s2 = inlined_call_operand.vmem [shape: f32[128,128], index: 2, kind: input, shape index: {}]
  %s3 = inlined_call_operand.vmem [shape: f32[1,128], index: 3, kind: input, shape index: {}]
  %s4 = inlined_call_operand.vmem [shape: f32[1,128], index: 4, kind: input, shape index: {}]
  %s5 = inlined_call_operand.vmem [shape: f32[128,128], index: 5, kind: output, shape index: {}]
  %s6 = sld [smem:[#allocation0]]
  $region30: #{impl.1} parent=0
    _
  %s8 = ssub.s32 1, %s6
  %s9 = scalar_select 0, %s8, %s6
  // Predicated region
  $region2: #{impl.1} parent=0 // pred_check
    _
  $region3: #{impl.1} parent=0 // pred_check_branch
    %11 = sbr.rel (0) target = $region5
  $region4: #{impl.1} parent=0 // pred_region
    _
  $region5: #{impl.1} parent=0 // pred_fallthru
    _
  // Predicated region
  $region6: #{impl.1} parent=0 // pred_check
    _
  $region7: #{impl.1} parent=0 // pred_check_branch
    %13 = sbr.rel (0) target = $region9
  $region8: #{impl.1} parent=0 // pred_region
    _
  $region9: #{impl.1} parent=0 // pred_fallthru
    _
  // Predicated region
  $region10: #{impl.1} parent=0 // pred_check
    _
  $region11: #{impl.1} parent=0 // pred_check_branch
    %15 = sbr.rel (0) target = $region13
  $region12: #{impl.1} parent=0 // pred_region
    _
  $region13: #{impl.1} parent=0 // pred_fallthru
    _
  // Predicated region
  $region14: #{impl.1} parent=0 // pred_check
    _
  $region15: #{impl.1} parent=0 // pred_check_branch
    %17 = sbr.rel (0) target = $region17
  $region16: #{impl.1} parent=0 // pred_region
    _
  $region17: #{impl.1} parent=0 // pred_fallthru
    _
  // Predicated region
  $region18: #{impl.1} parent=0 // pred_check
    _
  $region19: #{impl.1} parent=0 // pred_check_branch
    %19 = sbr.rel (0) target = $region21
  $region20: #{impl.1} parent=0 // pred_region
    _
  $region21: #{impl.1} parent=0 // pred_fallthru
    _
  %v20 = vld [vmem:[%s0] sm:$0xff]
  %v21 = vld [vmem:[%s0 + $0x8] sm:$0xff]
  %v22 = vld [vmem:[%s0 + $0x10] sm:$0xff]
  %v23 = vld [vmem:[%s0 + $0x18] sm:$0xff]
  %v24 = vld [vmem:[%s0 + $0x20] sm:$0xff]
  %v25 = vld [vmem:[%s0 + $0x28] sm:$0xff]
  %v26 = vld [vmem:[%s0 + $0x30] sm:$0xff]
  %v27 = vld [vmem:[%s0 + $0x38] sm:$0xff]
  %v28 = vld [vmem:[%s0 + $0x40] sm:$0xff]
  %v29 = vld [vmem:[%s0 + $0x48] sm:$0xff]
  %v30 = vld [vmem:[%s0 + $0x50] sm:$0xff]
  %v31 = vld [vmem:[%s0 + $0x58] sm:$0xff]
  %v32 = vld [vmem:[%s0 + $0x60] sm:$0xff]
  %v33 = vld [vmem:[%s0 + $0x68] sm:$0xff]
  %v34 = vld [vmem:[%s0 + $0x70] sm:$0xff]
  %v35 = vld [vmem:[%s0 + $0x78] sm:$0xff]
  %v36 = vld [vmem:[%s1] sm:$0xff]
  %v37 = vld [vmem:[%s1 + $0x8] sm:$0xff]
  %v38 = vld [vmem:[%s1 + $0x10] sm:$0xff]
  %v39 = vld [vmem:[%s1 + $0x18] sm:$0xff]
  %v40 = vld [vmem:[%s1 + $0x20] sm:$0xff]
  %v41 = vld [vmem:[%s1 + $0x28] sm:$0xff]
  %v42 = vld [vmem:[%s1 + $0x30] sm:$0xff]
  %v43 = vld [vmem:[%s1 + $0x38] sm:$0xff]
  %v44 = vld [vmem:[%s1 + $0x40] sm:$0xff]
  %v45 = vld [vmem:[%s1 + $0x48] sm:$0xff]
  %v46 = vld [vmem:[%s1 + $0x50] sm:$0xff]
  %v47 = vld [vmem:[%s1 + $0x58] sm:$0xff]
  %v48 = vld [vmem:[%s1 + $0x60] sm:$0xff]
  %v49 = vld [vmem:[%s1 + $0x68] sm:$0xff]
  %v50 = vld [vmem:[%s1 + $0x70] sm:$0xff]
  %v51 = vld [vmem:[%s1 + $0x78] sm:$0xff]
  %v52 = vld [vmem:[%s4] sm:$0x1]
  %v54 = vlaneseq
  %v55 = vshrl.u32 %v54, 7
  %v56 = vsub.s32 0, %v55
  %v57 = vrot.slane %v52, %v56
  %59 = vmatprep.subr.mxu0 0.0
  %60 = vmatpush1.msra.mxu0 %v36
  %61 = vmatprep.subr.mxu0 0.0
  %62 = vmatpush1.msra.mxu0 %v37
  %63 = vmatprep.subr.mxu0 0.0
  %64 = vmatpush1.msra.mxu0 %v38
  %65 = vmatprep.subr.mxu0 0.0
  %66 = vmatpush1.msra.mxu0 %v39
  %67 = vmatprep.subr.mxu0 0.0
  %68 = vmatpush1.msra.mxu0 %v40
  %69 = vmatprep.subr.mxu0 0.0
  %70 = vmatpush1.msra.mxu0 %v41
  %71 = vmatprep.subr.mxu0 0.0
  %72 = vmatpush1.msra.mxu0 %v42
  %73 = vmatprep.subr.mxu0 0.0
  %74 = vmatpush1.msra.mxu0 %v43
  %75 = vmatprep.subr.mxu0 0.0
  %76 = vmatpush1.msra.mxu0 %v44
  %77 = vmatprep.subr.mxu0 0.0
  %78 = vmatpush1.msra.mxu0 %v45
  %79 = vmatprep.subr.mxu0 0.0
  %80 = vmatpush1.msra.mxu0 %v46
  %81 = vmatprep.subr.mxu0 0.0
  %82 = vmatpush1.msra.mxu0 %v47
  %83 = vmatprep.subr.mxu0 0.0
  %84 = vmatpush1.msra.mxu0 %v48
  %85 = vmatprep.subr.mxu0 0.0
  %86 = vmatpush1.msra.mxu0 %v49
  %87 = vmatprep.subr.mxu0 0.0
  %88 = vmatpush1.msra.mxu0 %v50
  %89 = vmatprep.subr.mxu0 0.0
  %90 = vmatpush1.msra.mxu0 %v51
  %91 = vmatprep.subr.mxu0 0.0
  %92 = vmatpush1.msra.mxu0 0.0
  %93 = vmatprep.subr.mxu0 0.0
  %94 = vmatpush1.msra.mxu0 0.0
  %95 = vmatprep.subr.mxu0 0.0
  %96 = vmatpush1.msra.mxu0 0.0
  %97 = vmatprep.subr.mxu0 0.0
  %98 = vmatpush1.msra.mxu0 0.0
  %99 = vmatprep.subr.mxu0 0.0
  %100 = vmatpush1.msra.mxu0 0.0
  %101 = vmatprep.subr.mxu0 0.0
  %102 = vmatpush1.msra.mxu0 0.0
  %103 = vmatprep.subr.mxu0 0.0
  %104 = vmatpush1.msra.mxu0 0.0
  %105 = vmatprep.subr.mxu0 0.0
  %106 = vmatpush1.msra.mxu0 0.0
  %107 = vmatprep.subr.mxu0 0.0
  %108 = vmatpush1.msra.mxu0 0.0
  %109 = vmatprep.subr.mxu0 0.0
  %110 = vmatpush1.msra.mxu0 0.0
  %111 = vmatprep.subr.mxu0 0.0
  %112 = vmatpush1.msra.mxu0 0.0
  %113 = vmatprep.subr.mxu0 0.0
  %114 = vmatpush1.msra.mxu0 0.0
  %115 = vmatprep.subr.mxu0 0.0
  %116 = vmatpush1.msra.mxu0 0.0
  %117 = vmatprep.subr.mxu0 0.0
  %118 = vmatpush1.msra.mxu0 0.0
  %119 = vmatprep.subr.mxu0 0.0
  %120 = vmatpush1.msra.mxu0 0.0
  %121 = vmatprep.subr.mxu0 0.0
  %122 = vmatpush1.msra.mxu0 0.0
  %123 = vmatprep.mubr.f32.mxu0 0.0
  %124 = vmatmul.mubr.f32.gmra.mrb[0].mxu0 %v20
  %v125 = vpop.f32.mrb[0].mxu0
  %v126 = vadd.f32 %v57, %v125
  %v127 = vpop.f32.mrb[0].mxu0
  %128 = vmatprep.mubr.f32.mxu0 0.0
  %129 = vmatmul.mubr.f32.gmra.mrb[0].mxu0 %v21
  %v130 = vpop.f32.mrb[0].mxu0
  %v131 = vadd.f32 %v57, %v130
  %v132 = vpop.f32.mrb[0].mxu0
  %133 = vmatprep.mubr.f32.mxu0 0.0
  %134 = vmatmul.mubr.f32.gmra.mrb[0].mxu0 %v22
  %v135 = vpop.f32.mrb[0].mxu0
  %v136 = vadd.f32 %v57, %v135
  %v137 = vpop.f32.mrb[0].mxu0
  %138 = vmatprep.mubr.f32.mxu0 0.0
  %139 = vmatmul.mubr.f32.gmra.mrb[0].mxu0 %v23
  %v140 = vpop.f32.mrb[0].mxu0
  %v141 = vadd.f32 %v57, %v140
  %v142 = vpop.f32.mrb[0].mxu0
  %143 = vmatprep.mubr.f32.mxu0 0.0
  %144 = vmatmul.mubr.f32.gmra.mrb[0].mxu0 %v24
  %v145 = vpop.f32.mrb[0].mxu0
  %v146 = vadd.f32 %v57, %v145
  %v147 = vpop.f32.mrb[0].mxu0
  %148 = vmatprep.mubr.f32.mxu0 0.0
  %149 = vmatmul.mubr.f32.gmra.mrb[0].mxu0 %v25
  %v150 = vpop.f32.mrb[0].mxu0
  %v151 = vadd.f32 %v57, %v150
  %v152 = vpop.f32.mrb[0].mxu0
  %153 = vmatprep.mubr.f32.mxu0 0.0
  %154 = vmatmul.mubr.f32.gmra.mrb[0].mxu0 %v26
  %v155 = vpop.f32.mrb[0].mxu0
  %v156 = vadd.f32 %v57, %v155
  %v157 = vpop.f32.mrb[0].mxu0
  %158 = vmatprep.mubr.f32.mxu0 0.0
  %159 = vmatmul.mubr.f32.gmra.mrb[0].mxu0 %v27
  %v160 = vpop.f32.mrb[0].mxu0
  %v161 = vadd.f32 %v57, %v160
  %v162 = vpop.f32.mrb[0].mxu0
  %163 = vmatprep.mubr.f32.mxu0 0.0
  %164 = vmatmul.mubr.f32.gmra.mrb[0].mxu0 %v28
  %v165 = vpop.f32.mrb[0].mxu0
  %v166 = vadd.f32 %v57, %v165
  %v167 = vpop.f32.mrb[0].mxu0
  %168 = vmatprep.mubr.f32.mxu0 0.0
  %169 = vmatmul.mubr.f32.gmra.mrb[0].mxu0 %v29
  %v170 = vpop.f32.mrb[0].mxu0
  %v171 = vadd.f32 %v57, %v170
  %v172 = vpop.f32.mrb[0].mxu0
  %173 = vmatprep.mubr.f32.mxu0 0.0
  %174 = vmatmul.mubr.f32.gmra.mrb[0].mxu0 %v30
  %v175 = vpop.f32.mrb[0].mxu0
  %v176 = vadd.f32 %v57, %v175
  %v177 = vpop.f32.mrb[0].mxu0
  %178 = vmatprep.mubr.f32.mxu0 0.0
  %179 = vmatmul.mubr.f32.gmra.mrb[0].mxu0 %v31
  %v180 = vpop.f32.mrb[0].mxu0
  %v181 = vadd.f32 %v57, %v180
  %v182 = vpop.f32.mrb[0].mxu0
  %183 = vmatprep.mubr.f32.mxu0 0.0
  %184 = vmatmul.mubr.f32.gmra.mrb[0].mxu0 %v32
  %v185 = vpop.f32.mrb[0].mxu0
  %v186 = vadd.f32 %v57, %v185
  %v187 = vpop.f32.mrb[0].mxu0
  %188 = vmatprep.mubr.f32.mxu0 0.0
  %189 = vmatmul.mubr.f32.gmra.mrb[0].mxu0 %v33
  %v190 = vpop.f32.mrb[0].mxu0
  %v191 = vadd.f32 %v57, %v190
  %v192 = vpop.f32.mrb[0].mxu0
  %193 = vmatprep.mubr.f32.mxu0 0.0
  %194 = vmatmul.mubr.f32.gmra.mrb[0].mxu0 %v34
  %v195 = vpop.f32.mrb[0].mxu0
  %v196 = vadd.f32 %v57, %v195
  %v197 = vpop.f32.mrb[0].mxu0
  %198 = vmatprep.mubr.f32.mxu0 0.0
  %199 = vmatmul.mubr.f32.gmra.mrb[0].mxu0 %v35
  %v200 = vpop.f32.mrb[0].mxu0
  %v201 = vadd.f32 %v57, %v200
  %v202 = vpop.f32.mrb[0].mxu0
  %203 = vdwg.mxu0
  %v204 = vtanh.pop %v126
  %v205 = vtanh.pop %v131
  %v206 = vtanh.pop %v136
  %v207 = vtanh.pop %v141
  %v208 = vtanh.pop %v146
  %v209 = vtanh.pop %v151
  %v210 = vtanh.pop %v156
  %v211 = vtanh.pop %v161
  %v212 = vtanh.pop %v166
  %v213 = vtanh.pop %v171
  %v214 = vtanh.pop %v176
  %v215 = vtanh.pop %v181
  %v216 = vtanh.pop %v186
  %v217 = vtanh.pop %v191
  %v218 = vtanh.pop %v196
  %v219 = vtanh.pop %v201
  %v220 = vtanh.pop %v204
  %v221 = vtanh.pop %v205
  %v222 = vtanh.pop %v206
  %v223 = vtanh.pop %v207
  %v224 = vtanh.pop %v208
  %v225 = vtanh.pop %v209
  %v226 = vtanh.pop %v210
  %v227 = vtanh.pop %v211
  %v228 = vtanh.pop %v212
  %v229 = vtanh.pop %v213
  %v230 = vtanh.pop %v214
  %v231 = vtanh.pop %v215
  %v232 = vtanh.pop %v216
  %v233 = vtanh.pop %v217
  %v234 = vtanh.pop %v218
  %v235 = vtanh.pop %v219
  %v236 = vld [vmem:[%s2] sm:$0xff]
  %v237 = vld [vmem:[%s2 + $0x8] sm:$0xff]
  %v238 = vld [vmem:[%s2 + $0x10] sm:$0xff]
  %v239 = vld [vmem:[%s2 + $0x18] sm:$0xff]
  %v240 = vld [vmem:[%s2 + $0x20] sm:$0xff]
  %v241 = vld [vmem:[%s2 + $0x28] sm:$0xff]
  %v242 = vld [vmem:[%s2 + $0x30] sm:$0xff]
  %v243 = vld [vmem:[%s2 + $0x38] sm:$0xff]
  %v244 = vld [vmem:[%s2 + $0x40] sm:$0xff]
  %v245 = vld [vmem:[%s2 + $0x48] sm:$0xff]
  %v246 = vld [vmem:[%s2 + $0x50] sm:$0xff]
  %v247 = vld [vmem:[%s2 + $0x58] sm:$0xff]
  %v248 = vld [vmem:[%s2 + $0x60] sm:$0xff]
  %v249 = vld [vmem:[%s2 + $0x68] sm:$0xff]
  %v250 = vld [vmem:[%s2 + $0x70] sm:$0xff]
  %v251 = vld [vmem:[%s2 + $0x78] sm:$0xff]
  %v252 = vld [vmem:[%s3] sm:$0x1]
  %v254 = vlaneseq
  %v255 = vshrl.u32 %v254, 7
  %v256 = vsub.s32 0, %v255
  %v257 = vrot.slane %v252, %v256
  %259 = vmatprep.subr.mxu0 0.0
  %260 = vmatpush1.msra.mxu0 %v236
  %261 = vmatprep.subr.mxu0 0.0
  %262 = vmatpush1.msra.mxu0 %v237
  %263 = vmatprep.subr.mxu0 0.0
  %264 = vmatpush1.msra.mxu0 %v238
  %265 = vmatprep.subr.mxu0 0.0
  %266 = vmatpush1.msra.mxu0 %v239
  %267 = vmatprep.subr.mxu0 0.0
  %268 = vmatpush1.msra.mxu0 %v240
  %269 = vmatprep.subr.mxu0 0.0
  %270 = vmatpush1.msra.mxu0 %v241
  %271 = vmatprep.subr.mxu0 0.0
  %272 = vmatpush1.msra.mxu0 %v242
  %273 = vmatprep.subr.mxu0 0.0
  %274 = vmatpush1.msra.mxu0 %v243
  %275 = vmatprep.subr.mxu0 0.0
  %276 = vmatpush1.msra.mxu0 %v244
  %277 = vmatprep.subr.mxu0 0.0
  %278 = vmatpush1.msra.mxu0 %v245
  %279 = vmatprep.subr.mxu0 0.0
  %280 = vmatpush1.msra.mxu0 %v246
  %281 = vmatprep.subr.mxu0 0.0
  %282 = vmatpush1.msra.mxu0 %v247
  %283 = vmatprep.subr.mxu0 0.0
  %284 = vmatpush1.msra.mxu0 %v248
  %285 = vmatprep.subr.mxu0 0.0
  %286 = vmatpush1.msra.mxu0 %v249
  %287 = vmatprep.subr.mxu0 0.0
  %288 = vmatpush1.msra.mxu0 %v250
  %289 = vmatprep.subr.mxu0 0.0
  %290 = vmatpush1.msra.mxu0 %v251
  %291 = vmatprep.subr.mxu0 0.0
  %292 = vmatpush1.msra.mxu0 0.0
  %293 = vmatprep.subr.mxu0 0.0
  %294 = vmatpush1.msra.mxu0 0.0
  %295 = vmatprep.subr.mxu0 0.0
  %296 = vmatpush1.msra.mxu0 0.0
  %297 = vmatprep.subr.mxu0 0.0
  %298 = vmatpush1.msra.mxu0 0.0
  %299 = vmatprep.subr.mxu0 0.0
  %300 = vmatpush1.msra.mxu0 0.0
  %301 = vmatprep.subr.mxu0 0.0
  %302 = vmatpush1.msra.mxu0 0.0
  %303 = vmatprep.subr.mxu0 0.0
  %304 = vmatpush1.msra.mxu0 0.0
  %305 = vmatprep.subr.mxu0 0.0
  %306 = vmatpush1.msra.mxu0 0.0
  %307 = vmatprep.subr.mxu0 0.0
  %308 = vmatpush1.msra.mxu0 0.0
  %309 = vmatprep.subr.mxu0 0.0
  %310 = vmatpush1.msra.mxu0 0.0
  %311 = vmatprep.subr.mxu0 0.0
  %312 = vmatpush1.msra.mxu0 0.0
  %313 = vmatprep.subr.mxu0 0.0
  %314 = vmatpush1.msra.mxu0 0.0
  %315 = vmatprep.subr.mxu0 0.0
  %316 = vmatpush1.msra.mxu0 0.0
  %317 = vmatprep.subr.mxu0 0.0
  %318 = vmatpush1.msra.mxu0 0.0
  %319 = vmatprep.subr.mxu0 0.0
  %320 = vmatpush1.msra.mxu0 0.0
  %321 = vmatprep.subr.mxu0 0.0
  %322 = vmatpush1.msra.mxu0 0.0
  %323 = vmatprep.mubr.f32.mxu0 0.0
  %324 = vmatmul.mubr.f32.gmra.mrb[0].mxu0 %v220
  %v325 = vpop.f32.mrb[0].mxu0
  %v326 = vadd.f32 %v257, %v325
  %v327 = vpop.f32.mrb[0].mxu0
  %328 = vmatprep.mubr.f32.mxu0 0.0
  %329 = vmatmul.mubr.f32.gmra.mrb[0].mxu0 %v221
  %v330 = vpop.f32.mrb[0].mxu0
  %v331 = vadd.f32 %v257, %v330
  %v332 = vpop.f32.mrb[0].mxu0
  %333 = vmatprep.mubr.f32.mxu0 0.0
  %334 = vmatmul.mubr.f32.gmra.mrb[0].mxu0 %v222
  %v335 = vpop.f32.mrb[0].mxu0
  %v336 = vadd.f32 %v257, %v335
  %v337 = vpop.f32.mrb[0].mxu0
  %338 = vmatprep.mubr.f32.mxu0 0.0
  %339 = vmatmul.mubr.f32.gmra.mrb[0].mxu0 %v223
  %v340 = vpop.f32.mrb[0].mxu0
  %v341 = vadd.f32 %v257, %v340
  %v342 = vpop.f32.mrb[0].mxu0
  %343 = vmatprep.mubr.f32.mxu0 0.0
  %344 = vmatmul.mubr.f32.gmra.mrb[0].mxu0 %v224
  %v345 = vpop.f32.mrb[0].mxu0
  %v346 = vadd.f32 %v257, %v345
  %v347 = vpop.f32.mrb[0].mxu0
  %348 = vmatprep.mubr.f32.mxu0 0.0
  %349 = vmatmul.mubr.f32.gmra.mrb[0].mxu0 %v225
  %v350 = vpop.f32.mrb[0].mxu0
  %v351 = vadd.f32 %v257, %v350
  %v352 = vpop.f32.mrb[0].mxu0
  %353 = vmatprep.mubr.f32.mxu0 0.0
  %354 = vmatmul.mubr.f32.gmra.mrb[0].mxu0 %v226
  %v355 = vpop.f32.mrb[0].mxu0
  %v356 = vadd.f32 %v257, %v355
  %v357 = vpop.f32.mrb[0].mxu0
  %358 = vmatprep.mubr.f32.mxu0 0.0
  %359 = vmatmul.mubr.f32.gmra.mrb[0].mxu0 %v227
  %v360 = vpop.f32.mrb[0].mxu0
  %v361 = vadd.f32 %v257, %v360
  %v362 = vpop.f32.mrb[0].mxu0
  %363 = vmatprep.mubr.f32.mxu0 0.0
  %364 = vmatmul.mubr.f32.gmra.mrb[0].mxu0 %v228
  %v365 = vpop.f32.mrb[0].mxu0
  %v366 = vadd.f32 %v257, %v365
  %v367 = vpop.f32.mrb[0].mxu0
  %368 = vmatprep.mubr.f32.mxu0 0.0
  %369 = vmatmul.mubr.f32.gmra.mrb[0].mxu0 %v229
  %v370 = vpop.f32.mrb[0].mxu0
  %v371 = vadd.f32 %v257, %v370
  %v372 = vpop.f32.mrb[0].mxu0
  %373 = vmatprep.mubr.f32.mxu0 0.0
  %374 = vmatmul.mubr.f32.gmra.mrb[0].mxu0 %v230
  %v375 = vpop.f32.mrb[0].mxu0
  %v376 = vadd.f32 %v257, %v375
  %v377 = vpop.f32.mrb[0].mxu0
  %378 = vmatprep.mubr.f32.mxu0 0.0
  %379 = vmatmul.mubr.f32.gmra.mrb[0].mxu0 %v231
  %v380 = vpop.f32.mrb[0].mxu0
  %v381 = vadd.f32 %v257, %v380
  %v382 = vpop.f32.mrb[0].mxu0
  %383 = vmatprep.mubr.f32.mxu0 0.0
  %384 = vmatmul.mubr.f32.gmra.mrb[0].mxu0 %v232
  %v385 = vpop.f32.mrb[0].mxu0
  %v386 = vadd.f32 %v257, %v385
  %v387 = vpop.f32.mrb[0].mxu0
  %388 = vmatprep.mubr.f32.mxu0 0.0
  %389 = vmatmul.mubr.f32.gmra.mrb[0].mxu0 %v233
  %v390 = vpop.f32.mrb[0].mxu0
  %v391 = vadd.f32 %v257, %v390
  %v392 = vpop.f32.mrb[0].mxu0
  %393 = vmatprep.mubr.f32.mxu0 0.0
  %394 = vmatmul.mubr.f32.gmra.mrb[0].mxu0 %v234
  %v395 = vpop.f32.mrb[0].mxu0
  %v396 = vadd.f32 %v257, %v395
  %v397 = vpop.f32.mrb[0].mxu0
  %398 = vmatprep.mubr.f32.mxu0 0.0
  %399 = vmatmul.mubr.f32.gmra.mrb[0].mxu0 %v235
  %v400 = vpop.f32.mrb[0].mxu0
  %v401 = vadd.f32 %v257, %v400
  %v402 = vpop.f32.mrb[0].mxu0
  %403 = vdwg.mxu0
  %v404 = vmul.f32 %v326, 0.5
  %v405 = vmul.f32 %v331, 0.5
  %v406 = vmul.f32 %v336, 0.5
  %v407 = vmul.f32 %v341, 0.5
  %v408 = vmul.f32 %v346, 0.5
  %v409 = vmul.f32 %v351, 0.5
  %v410 = vmul.f32 %v356, 0.5
  %v411 = vmul.f32 %v361, 0.5
  %v412 = vmul.f32 %v366, 0.5
  %v413 = vmul.f32 %v371, 0.5
  %v414 = vmul.f32 %v376, 0.5
  %v415 = vmul.f32 %v381, 0.5
  %v416 = vmul.f32 %v386, 0.5
  %v417 = vmul.f32 %v391, 0.5
  %v418 = vmul.f32 %v396, 0.5
  %v419 = vmul.f32 %v401, 0.5
  %420 = vst [vmem:[%s5] sm:$0xff] %v404
  %421 = vst [vmem:[%s5 + $0x8] sm:$0xff] %v405
  %422 = vst [vmem:[%s5 + $0x10] sm:$0xff] %v406
  %423 = vst [vmem:[%s5 + $0x18] sm:$0xff] %v407
  %424 = vst [vmem:[%s5 + $0x20] sm:$0xff] %v408
  %425 = vst [vmem:[%s5 + $0x28] sm:$0xff] %v409
  %426 = vst [vmem:[%s5 + $0x30] sm:$0xff] %v410
  %427 = vst [vmem:[%s5 + $0x38] sm:$0xff] %v411
  %428 = vst [vmem:[%s5 + $0x40] sm:$0xff] %v412
  %429 = vst [vmem:[%s5 + $0x48] sm:$0xff] %v413
  %430 = vst [vmem:[%s5 + $0x50] sm:$0xff] %v414
  %431 = vst [vmem:[%s5 + $0x58] sm:$0xff] %v415
  %432 = vst [vmem:[%s5 + $0x60] sm:$0xff] %v416
  %433 = vst [vmem:[%s5 + $0x68] sm:$0xff] %v417
  %434 = vst [vmem:[%s5 + $0x70] sm:$0xff] %v418
  %435 = vst [vmem:[%s5 + $0x78] sm:$0xff] %v419
  // Predicated region
  $region22: #{impl.1} parent=0 // pred_check
    _
  $region23: #{impl.1} parent=0 // pred_check_branch
    %437 = sbr.rel (0) target = $region25
  $region24: #{impl.1} parent=0 // pred_region
    _
  $region25: #{impl.1} parent=0 // pred_fallthru
    _
  // Predicated region
  $region26: #{impl.1} parent=0 // pred_check
    _
  $region27: #{impl.1} parent=0 // pred_check_branch
    %439 = sbr.rel (0) target = $region29
  $region28: #{impl.1} parent=0 // pred_region
    _
  $region29: #{impl.1} parent=0 // pred_fallthru
    _

</llo_original>
